<compile_context>
chip_gen: v5e
topology: v5e:2x2
jax: 0.10.0
libtpu: 0.0.40
codegen_flags: <defaults>
</compile_context>

<pallas_src>
import functools

import jax
import jax.numpy as jnp
from jax import lax
from jax.experimental import pallas as pl
from jax.experimental.pallas import tpu as pltpu

INPUT_SIZE = 32
HIDDEN = 128
BN_EPS = 1e-5
MAX_TILE_B = 8192          # rows per batch tile (multiple of 128) ~= 1 MiB of x


def _round_up(n, m):
    return ((n + m - 1) // m) * m


# -------- Pass 1: per-tile partial sums of h and h^2, h = x @ W1 (no bias) --
def _stats_kernel(x_ref, w1_ref, s1_ref, s2_ref, *, true_rows):
    tb = x_ref.shape[0]
    # Mask rows past the true batch size (tail tile of a ragged batch and,
    # defensively, any OOB garbage the partial-block DMA may have produced).
    rem = true_rows - pl.program_id(0) * tb
    rows = lax.broadcasted_iota(jnp.int32, (tb, 1), 0)
    x = jnp.where(rows < rem, x_ref[...], 0.0)
    h = jnp.dot(x, w1_ref[...], preferred_element_type=jnp.float32)
    s1_ref[...] = jnp.sum(h, axis=0, keepdims=True)[None]          # (1,1,H)
    s2_ref[...] = jnp.sum(h * h, axis=0, keepdims=True)[None]      # (1,1,H)


# -------- Pass 2: fold BN stats + normalize + ReLU + Linear(128, 1) ---------
def _apply_kernel(x_ref, w1_ref, s1_ref, s2_ref, gamma_ref, beta_ref,
                  w2_ref, b2_ref, o_ref, *, true_rows):
    # BN fold from the resident per-tile partials (128-wide, hidden under DMA;
    # recomputed per tile so it stays correct under megacore sharding).
    inv_b = 1.0 / true_rows
    s1 = jnp.sum(s1_ref[...], axis=0)                      # (1, H)
    s2 = jnp.sum(s2_ref[...], axis=0)                      # (1, H)
    mean = s1 * inv_b
    var = jnp.maximum(s2 * inv_b - mean * mean, 0.0)       # biased batch var
    scale = gamma_ref[...] * lax.rsqrt(var + BN_EPS)       # (1, H)
    shift = beta_ref[...] - mean * scale

    h = jnp.dot(x_ref[...], w1_ref[...], preferred_element_type=jnp.float32)
    h = jnp.maximum(h * scale + shift, 0.0)                # BN (one FMA) + ReLU
    p = h * w2_ref[...]                                    # (tb, H)

    # Linear(128, 1) as an in-row reduction, laid out lane-dense:
    # rows are regrouped into (tb//128, 128) so the store is fully dense.
    tb = p.shape[0]
    y = jnp.sum(p.reshape(tb // 128, 128, HIDDEN), axis=-1)   # (tb//128, 128)
    o_ref[...] = (y + b2_ref[...])[None]


def prepare_params(params):
    """One-time conversion from PyTorch (out, in) layout to kernel layout."""
    w1, b1, gamma, beta, w2, b2 = params
    del b1   # cancels exactly under training-mode BatchNorm mean subtraction
    return (jnp.asarray(w1.T, jnp.float32),                     # (IN, HIDDEN)
            jnp.asarray(gamma, jnp.float32).reshape(1, HIDDEN),  # (1, HIDDEN)
            jnp.asarray(beta, jnp.float32).reshape(1, HIDDEN),   # (1, HIDDEN)
            jnp.asarray(w2, jnp.float32).reshape(1, HIDDEN),     # (1, HIDDEN)
            jnp.asarray(b2, jnp.float32).reshape(1, 1))          # (1, 1)


@jax.jit
def regressor_forward(x, kernel_params):
    """x: any shape flattening to (-1, INPUT_SIZE). Returns (B, 1) float32."""
    w1_t, gamma, beta, w2_row, b2 = kernel_params

    x2d = x.reshape(-1, INPUT_SIZE).astype(jnp.float32)
    B = x2d.shape[0]

    # Tiny batches: pad once to a single 128-row tile (<= 16 KiB copy).
    # Anything larger is NOT padded -- ragged tails are masked in-kernel.
    if B < 128:
        x2d = jnp.pad(x2d, ((0, 128 - B), (0, 0)))
    Bp = x2d.shape[0]

    # Tile size: multiple of 128 (lane-dense output), as large as possible,
    # never exceeding the array, and aiming for >= 2 tiles (v7x megacore).
    tb = max(128, min(MAX_TILE_B, _round_up(-(-Bp // 2), 128)))
    tb = min(tb, (Bp // 128) * 128)
    n_tiles = (Bp + tb - 1) // tb
    t_chunks = tb // 128

    cparams = pltpu.CompilerParams(
        dimension_semantics=("parallel",),
        vmem_limit_bytes=32 * 1024 * 1024,
    )

    # -- Pass 1: per-tile partial sums (streamed over x) ----------------------
    s1p, s2p = pl.pallas_call(
        functools.partial(_stats_kernel, true_rows=B),
        out_shape=(jax.ShapeDtypeStruct((n_tiles, 1, HIDDEN), jnp.float32),
                   jax.ShapeDtypeStruct((n_tiles, 1, HIDDEN), jnp.float32)),
        grid=(n_tiles,),
        in_specs=[
            pl.BlockSpec((tb, INPUT_SIZE), lambda i: (i, 0)),
            pl.BlockSpec((INPUT_SIZE, HIDDEN), lambda i: (0, 0)),
        ],
        out_specs=(pl.BlockSpec((1, 1, HIDDEN), lambda i: (i, 0, 0)),
                   pl.BlockSpec((1, 1, HIDDEN), lambda i: (i, 0, 0))),
        compiler_params=cparams,
        cost_estimate=pl.CostEstimate(
            flops=2 * Bp * INPUT_SIZE * HIDDEN + 3 * Bp * HIDDEN,
            transcendentals=0,
            bytes_accessed=Bp * INPUT_SIZE * 4
            + INPUT_SIZE * HIDDEN * 4
            + 2 * n_tiles * HIDDEN * 4,
        ),
    )(x2d, w1_t)

    # -- Pass 2: BN fold + normalize + ReLU + Linear2 (streamed over x) -------
    out = pl.pallas_call(
        functools.partial(_apply_kernel, true_rows=B),
        out_shape=jax.ShapeDtypeStruct((n_tiles, t_chunks, 128), jnp.float32),
        grid=(n_tiles,),
        in_specs=[
            pl.BlockSpec((tb, INPUT_SIZE), lambda i: (i, 0)),
            pl.BlockSpec((INPUT_SIZE, HIDDEN), lambda i: (0, 0)),
            pl.BlockSpec((n_tiles, 1, HIDDEN), lambda i: (0, 0, 0)),  # resident
            pl.BlockSpec((n_tiles, 1, HIDDEN), lambda i: (0, 0, 0)),  # resident
            pl.BlockSpec((1, HIDDEN), lambda i: (0, 0)),
            pl.BlockSpec((1, HIDDEN), lambda i: (0, 0)),
            pl.BlockSpec((1, HIDDEN), lambda i: (0, 0)),
            pl.BlockSpec((1, 1), lambda i: (0, 0)),
        ],
        out_specs=pl.BlockSpec((1, t_chunks, 128), lambda i: (i, 0, 0)),
        compiler_params=cparams,
        cost_estimate=pl.CostEstimate(
            flops=2 * Bp * INPUT_SIZE * HIDDEN + 6 * Bp * HIDDEN,
            transcendentals=n_tiles * HIDDEN,
            bytes_accessed=Bp * INPUT_SIZE * 4
            + INPUT_SIZE * HIDDEN * 4
            + 2 * n_tiles * HIDDEN * 4
            + n_tiles * tb * 4,
        ),
    )(x2d, w1_t, s1p, s2p, gamma, beta, w2_row, b2)

    # (n_tiles, tb//128, 128) row-major flatten == global row order.
    return out.reshape(-1)[:B].reshape(B, 1)


def init_params(key):
    """Deterministic synthetic parameters matching nn.Linear / nn.BatchNorm1d."""
    k1, k2, k3, k4 = jax.random.split(key, 4)
    bound1 = 1.0 / jnp.sqrt(INPUT_SIZE)
    w1 = jax.random.uniform(k1, (HIDDEN, INPUT_SIZE), jnp.float32, -bound1, bound1)
    b1 = jax.random.uniform(k2, (HIDDEN,), jnp.float32, -bound1, bound1)
    gamma = jnp.ones((HIDDEN,), jnp.float32)
    beta = jnp.zeros((HIDDEN,), jnp.float32)
    bound2 = 1.0 / jnp.sqrt(HIDDEN)
    w2 = jax.random.uniform(k3, (1, HIDDEN), jnp.float32, -bound2, bound2)
    b2 = jax.random.uniform(k4, (1,), jnp.float32, -bound2, bound2)
    return (w1, b1, gamma, beta, w2, b2)


def reference_forward(x, params):
    """Pure-JAX reference of the PyTorch forward (training-mode BatchNorm)."""
    w1, b1, gamma, beta, w2, b2 = params
    x2d = x.reshape(-1, INPUT_SIZE).astype(jnp.float32)
    h = x2d @ w1.T + b1
    mean = jnp.mean(h, axis=0, keepdims=True)
    var = jnp.mean((h - mean) ** 2, axis=0, keepdims=True)
    h = (h - mean) / jnp.sqrt(var + BN_EPS) * gamma + beta
    h = jnp.maximum(h, 0.0)
    return h @ w2.T + b2


if __name__ == "__main__":
    key = jax.random.PRNGKey(0)
    kx1, kx2, kx3, kp = jax.random.split(key, 4)

    params = init_params(kp)
    kparams = prepare_params(params)   # hoisted transposes/reshapes (done once)

    # Tolerance note: the MXU runs f32 matmuls at DEFAULT precision (bf16
    # operand truncation), so kernel vs. pure-JAX reference differ at ~1e-3.
    TOL = 3e-3

    def _check(out, ref, shape, name):
        assert out.shape == shape, (name, out.shape)
        err = float(jnp.max(jnp.abs(out - ref)))
        assert jnp.allclose(out, ref, atol=TOL, rtol=TOL), (name, err)

    # Small 2-D batch (tiny-batch single-tile path).
    x_a = jax.random.normal(kx1, (8, INPUT_SIZE), jnp.float32)
    out_a = jax.block_until_ready(regressor_forward(x_a, kparams))
    _check(out_a, reference_forward(x_a, params), (8, 1), "x_a")

    # Higher-rank input (exercises view(-1, input_size)).
    x_b = jax.random.normal(kx2, (3, 5, INPUT_SIZE), jnp.float32)
    out_b = jax.block_until_ready(regressor_forward(x_b, kparams))
    _check(out_b, reference_forward(x_b, params), (15, 1), "x_b")

    # Ragged multi-tile batch (pad-free tail masking + 2-tile "parallel" grid).
    x_c = jax.random.normal(kx3, (300, INPUT_SIZE), jnp.float32)
    out_c = jax.block_until_ready(regressor_forward(x_c, kparams))
    _check(out_c, reference_forward(x_c, params), (300, 1), "x_c")

    print("KERNEL_OK")
</pallas_src>

<mosaic_0001>
module attributes {stable_mosaic.version = 11 : i64} {
  func.func @_stats_kernel(%arg0: i32, %arg1: memref<128x32xf32, #tpu.memory_space<vmem>>, %arg2: memref<32x128xf32, #tpu.memory_space<vmem>>, %arg3: memref<1x1x128xf32, #tpu.memory_space<vmem>>, %arg4: memref<1x1x128xf32, #tpu.memory_space<vmem>>) attributes {dimension_semantics = [#tpu.dimension_semantics<parallel>], iteration_bounds = array<i64: 1>, scalar_prefetch = 0 : i64, scratch_operands = 0 : i64, tpu.core_type = #tpu.core_type<tc>, window_params = [{transform_indices = @transform_0, window_bounds = array<i64: 128, 32>}, {pipeline_mode = #tpu.pipeline_mode<synchronous>, transform_indices = @transform_1, window_bounds = array<i64: 32, 128>}, {transform_indices = @transform_2, window_bounds = array<i64: 1, 1, 128>}, {transform_indices = @transform_3, window_bounds = array<i64: 1, 1, 128>}]} {
    %c128_i32 = arith.constant 128 : i32
    %0 = arith.muli %arg0, %c128_i32 : i32
    %c8_i32 = arith.constant 8 : i32
    %1 = arith.subi %c8_i32, %0 : i32
    %2 = tpu.iota {dimensions = array<i32: 0>} : vector<128x1xi32>
    %3 = vector.broadcast %1 : i32 to vector<128x1xi32>
    %4 = arith.cmpi slt, %2, %3 : vector<128x1xi32>
    %c0 = arith.constant 0 : index
    %c0_0 = arith.constant 0 : index
    %5 = vector.load %arg1[%c0, %c0_0] : memref<128x32xf32, #tpu.memory_space<vmem>>, vector<128x32xf32>
    %cst = arith.constant 0.000000e+00 : f32
    %6 = vector.shape_cast %4 : vector<128x1xi1> to vector<128x1xi1>
    %7 = vector.broadcast %6 : vector<128x1xi1> to vector<128x32xi1>
    %8 = vector.broadcast %cst : f32 to vector<128x32xf32>
    %9 = arith.select %7, %5, %8 : vector<128x32xi1>, vector<128x32xf32>
    %c0_1 = arith.constant 0 : index
    %c0_2 = arith.constant 0 : index
    %10 = vector.load %arg2[%c0_1, %c0_2] : memref<32x128xf32, #tpu.memory_space<vmem>>, vector<32x128xf32>
    %cst_3 = arith.constant dense<0.000000e+00> : vector<128x128xf32>
    %11 = tpu.matmul %9, %10, %cst_3 {dimension_numbers = #tpu.dot_dimension_numbers<[1], [0], [0], [1], [0, 0, 1, 1], [], []>} : vector<128x32xf32>, vector<32x128xf32>, vector<128x128xf32> -> vector<128x128xf32>
    %cst_4 = arith.constant dense<0.000000e+00> : vector<128xf32>
    %12 = vector.multi_reduction <add>, %11, %cst_4 [0] : vector<128x128xf32> to vector<128xf32>
    %13 = vector.shape_cast %12 : vector<128xf32> to vector<1x128xf32>
    %14 = vector.shape_cast %13 : vector<1x128xf32> to vector<1x1x128xf32>
    %c0_5 = arith.constant 0 : index
    %c0_6 = arith.constant 0 : index
    %c0_7 = arith.constant 0 : index
    %15 = vector.load %arg3[%c0_5, %c0_6, %c0_7] : memref<1x1x128xf32, #tpu.memory_space<vmem>>, vector<1x1x128xf32>
    tpu.vector_store %arg3[%c0_5, %c0_6, %c0_7], %14 {strides = array<i32>} : memref<1x1x128xf32, #tpu.memory_space<vmem>>, vector<1x1x128xf32>,
    %16 = arith.mulf %11, %11 : vector<128x128xf32>
    %cst_8 = arith.constant dense<0.000000e+00> : vector<128xf32>
    %17 = vector.multi_reduction <add>, %16, %cst_8 [0] : vector<128x128xf32> to vector<128xf32>
    %18 = vector.shape_cast %17 : vector<128xf32> to vector<1x128xf32>
    %19 = vector.shape_cast %18 : vector<1x128xf32> to vector<1x1x128xf32>
    %c0_9 = arith.constant 0 : index
    %c0_10 = arith.constant 0 : index
    %c0_11 = arith.constant 0 : index
    %20 = vector.load %arg4[%c0_9, %c0_10, %c0_11] : memref<1x1x128xf32, #tpu.memory_space<vmem>>, vector<1x1x128xf32>
    tpu.vector_store %arg4[%c0_9, %c0_10, %c0_11], %19 {strides = array<i32>} : memref<1x1x128xf32, #tpu.memory_space<vmem>>, vector<1x1x128xf32>,
    return
  }
  func.func @transform_0(%arg0: i32) -> (i32, i32) {
    %c0_i32 = arith.constant 0 : i32
    %c0_i32_0 = arith.constant 0 : i32
    return %arg0, %c0_i32 : i32, i32
  }
  func.func @transform_1(%arg0: i32) -> (i32, i32) {
    %c0_i32 = arith.constant 0 : i32
    %c0_i32_0 = arith.constant 0 : i32
    %c0_i32_1 = arith.constant 0 : i32
    return %c0_i32, %c0_i32_0 : i32, i32
  }
  func.func @transform_2(%arg0: i32) -> (i32, i32, i32) {
    %c0_i32 = arith.constant 0 : i32
    %c0_i32_0 = arith.constant 0 : i32
    %c0_i32_1 = arith.constant 0 : i32
    return %arg0, %c0_i32, %c0_i32_0 : i32, i32, i32
  }
  func.func @transform_3(%arg0: i32) -> (i32, i32, i32) {
    %c0_i32 = arith.constant 0 : i32
    %c0_i32_0 = arith.constant 0 : i32
    %c0_i32_1 = arith.constant 0 : i32
    return %arg0, %c0_i32, %c0_i32_0 : i32, i32, i32
  }
}

module attributes {stable_mosaic.version = 11 : i64} {
  func.func @_apply_kernel(%arg0: i32, %arg1: memref<128x32xf32, #tpu.memory_space<vmem>>, %arg2: memref<32x128xf32, #tpu.memory_space<vmem>>, %arg3: memref<1x1x128xf32, #tpu.memory_space<vmem>>, %arg4: memref<1x1x128xf32, #tpu.memory_space<vmem>>, %arg5: memref<1x128xf32, #tpu.memory_space<vmem>>, %arg6: memref<1x128xf32, #tpu.memory_space<vmem>>, %arg7: memref<1x128xf32, #tpu.memory_space<vmem>>, %arg8: memref<1x1xf32, #tpu.memory_space<vmem>>, %arg9: memref<1x1x128xf32, #tpu.memory_space<vmem>>) attributes {dimension_semantics = [#tpu.dimension_semantics<parallel>], iteration_bounds = array<i64: 1>, scalar_prefetch = 0 : i64, scratch_operands = 0 : i64, tpu.core_type = #tpu.core_type<tc>, window_params = [{transform_indices = @transform_0, window_bounds = array<i64: 128, 32>}, {pipeline_mode = #tpu.pipeline_mode<synchronous>, transform_indices = @transform_1, window_bounds = array<i64: 32, 128>}, {pipeline_mode = #tpu.pipeline_mode<synchronous>, transform_indices = @transform_2, window_bounds = array<i64: 1, 1, 128>}, {pipeline_mode = #tpu.pipeline_mode<synchronous>, transform_indices = @transform_3, window_bounds = array<i64: 1, 1, 128>}, {pipeline_mode = #tpu.pipeline_mode<synchronous>, transform_indices = @transform_4, window_bounds = array<i64: 1, 128>}, {pipeline_mode = #tpu.pipeline_mode<synchronous>, transform_indices = @transform_5, window_bounds = array<i64: 1, 128>}, {pipeline_mode = #tpu.pipeline_mode<synchronous>, transform_indices = @transform_6, window_bounds = array<i64: 1, 128>}, {pipeline_mode = #tpu.pipeline_mode<synchronous>, transform_indices = @transform_7, window_bounds = array<i64: 1, 1>}, {transform_indices = @transform_8, window_bounds = array<i64: 1, 1, 128>}]} {
    %c0 = arith.constant 0 : index
    %c0_0 = arith.constant 0 : index
    %c0_1 = arith.constant 0 : index
    %0 = vector.load %arg3[%c0, %c0_0, %c0_1] : memref<1x1x128xf32, #tpu.memory_space<vmem>>, vector<1x1x128xf32>
    %cst = arith.constant dense<0.000000e+00> : vector<1x128xf32>
    %1 = vector.multi_reduction <add>, %0, %cst [0] : vector<1x1x128xf32> to vector<1x128xf32>
    %c0_2 = arith.constant 0 : index
    %c0_3 = arith.constant 0 : index
    %c0_4 = arith.constant 0 : index
    %2 = vector.load %arg4[%c0_2, %c0_3, %c0_4] : memref<1x1x128xf32, #tpu.memory_space<vmem>>, vector<1x1x128xf32>
    %cst_5 = arith.constant dense<0.000000e+00> : vector<1x128xf32>
    %3 = vector.multi_reduction <add>, %2, %cst_5 [0] : vector<1x1x128xf32> to vector<1x128xf32>
    %cst_6 = arith.constant 1.250000e-01 : f32
    %4 = vector.broadcast %cst_6 : f32 to vector<1x128xf32>
    %5 = arith.mulf %1, %4 : vector<1x128xf32>
    %cst_7 = arith.constant 1.250000e-01 : f32
    %6 = vector.broadcast %cst_7 : f32 to vector<1x128xf32>
    %7 = arith.mulf %3, %6 : vector<1x128xf32>
    %8 = arith.mulf %5, %5 : vector<1x128xf32>
    %9 = arith.subf %7, %8 : vector<1x128xf32>
    %cst_8 = arith.constant 0.000000e+00 : f32
    %10 = vector.broadcast %cst_8 : f32 to vector<1x128xf32>
    %11 = arith.maximumf %9, %10 : vector<1x128xf32>
    %c0_9 = arith.constant 0 : index
    %c0_10 = arith.constant 0 : index
    %12 = vector.load %arg5[%c0_9, %c0_10] : memref<1x128xf32, #tpu.memory_space<vmem>>, vector<1x128xf32>
    %cst_11 = arith.constant 9.99999974E-6 : f32
    %13 = vector.broadcast %cst_11 : f32 to vector<1x128xf32>
    %14 = arith.addf %11, %13 : vector<1x128xf32>
    %15 = math.rsqrt %14 : vector<1x128xf32>
    %16 = arith.mulf %12, %15 : vector<1x128xf32>
    %c0_12 = arith.constant 0 : index
    %c0_13 = arith.constant 0 : index
    %17 = vector.load %arg6[%c0_12, %c0_13] : memref<1x128xf32, #tpu.memory_space<vmem>>, vector<1x128xf32>
    %18 = arith.mulf %5, %16 : vector<1x128xf32>
    %19 = arith.subf %17, %18 : vector<1x128xf32>
    %c0_14 = arith.constant 0 : index
    %c0_15 = arith.constant 0 : index
    %20 = vector.load %arg1[%c0_14, %c0_15] : memref<128x32xf32, #tpu.memory_space<vmem>>, vector<128x32xf32>
    %c0_16 = arith.constant 0 : index
    %c0_17 = arith.constant 0 : index
    %21 = vector.load %arg2[%c0_16, %c0_17] : memref<32x128xf32, #tpu.memory_space<vmem>>, vector<32x128xf32>
    %cst_18 = arith.constant dense<0.000000e+00> : vector<128x128xf32>
    %22 = tpu.matmul %20, %21, %cst_18 {dimension_numbers = #tpu.dot_dimension_numbers<[1], [0], [0], [1], [0, 0, 1, 1], [], []>} : vector<128x32xf32>, vector<32x128xf32>, vector<128x128xf32> -> vector<128x128xf32>
    %23 = vector.broadcast %16 : vector<1x128xf32> to vector<128x128xf32>
    %24 = arith.mulf %22, %23 : vector<128x128xf32>
    %25 = vector.broadcast %19 : vector<1x128xf32> to vector<128x128xf32>
    %26 = arith.addf %24, %25 : vector<128x128xf32>
    %cst_19 = arith.constant 0.000000e+00 : f32
    %27 = vector.broadcast %cst_19 : f32 to vector<128x128xf32>
    %28 = arith.maximumf %26, %27 : vector<128x128xf32>
    %c0_20 = arith.constant 0 : index
    %c0_21 = arith.constant 0 : index
    %29 = vector.load %arg7[%c0_20, %c0_21] : memref<1x128xf32, #tpu.memory_space<vmem>>, vector<1x128xf32>
    %30 = vector.broadcast %29 : vector<1x128xf32> to vector<128x128xf32>
    %31 = arith.mulf %28, %30 : vector<128x128xf32>
    %32 = vector.shape_cast %31 : vector<128x128xf32> to vector<1x128x128xf32>
    %cst_22 = arith.constant dense<0.000000e+00> : vector<1x128xf32>
    %33 = vector.multi_reduction <add>, %32, %cst_22 [2] : vector<1x128x128xf32> to vector<1x128xf32>
    %c0_23 = arith.constant 0 : index
    %c0_24 = arith.constant 0 : index
    %34 = vector.load %arg8[%c0_23, %c0_24] : memref<1x1xf32, #tpu.memory_space<vmem>>, vector<1x1xf32>
    %35 = vector.broadcast %34 : vector<1x1xf32> to vector<1x128xf32>
    %36 = arith.addf %33, %35 : vector<1x128xf32>
    %37 = vector.shape_cast %36 : vector<1x128xf32> to vector<1x1x128xf32>
    %c0_25 = arith.constant 0 : index
    %c0_26 = arith.constant 0 : index
    %c0_27 = arith.constant 0 : index
    %38 = vector.load %arg9[%c0_25, %c0_26, %c0_27] : memref<1x1x128xf32, #tpu.memory_space<vmem>>, vector<1x1x128xf32>
    tpu.vector_store %arg9[%c0_25, %c0_26, %c0_27], %37 {strides = array<i32>} : memref<1x1x128xf32, #tpu.memory_space<vmem>>, vector<1x1x128xf32>,
    return
  }
  func.func @transform_0(%arg0: i32) -> (i32, i32) {
    %c0_i32 = arith.constant 0 : i32
    %c0_i32_0 = arith.constant 0 : i32
    return %arg0, %c0_i32 : i32, i32
  }
  func.func @transform_1(%arg0: i32) -> (i32, i32) {
    %c0_i32 = arith.constant 0 : i32
    %c0_i32_0 = arith.constant 0 : i32
    %c0_i32_1 = arith.constant 0 : i32
    return %c0_i32, %c0_i32_0 : i32, i32
  }
  func.func @transform_2(%arg0: i32) -> (i32, i32, i32) {
    %c0_i32 = arith.constant 0 : i32
    %c0_i32_0 = arith.constant 0 : i32
    %c0_i32_1 = arith.constant 0 : i32
    %c0_i32_2 = arith.constant 0 : i32
    return %c0_i32, %c0_i32_0, %c0_i32_1 : i32, i32, i32
  }
  func.func @transform_3(%arg0: i32) -> (i32, i32, i32) {
    %c0_i32 = arith.constant 0 : i32
    %c0_i32_0 = arith.constant 0 : i32
    %c0_i32_1 = arith.constant 0 : i32
    %c0_i32_2 = arith.constant 0 : i32
    return %c0_i32, %c0_i32_0, %c0_i32_1 : i32, i32, i32
  }
  func.func @transform_4(%arg0: i32) -> (i32, i32) {
    %c0_i32 = arith.constant 0 : i32
    %c0_i32_0 = arith.constant 0 : i32
    %c0_i32_1 = arith.constant 0 : i32
    return %c0_i32, %c0_i32_0 : i32, i32
  }
  func.func @transform_5(%arg0: i32) -> (i32, i32) {
    %c0_i32 = arith.constant 0 : i32
    %c0_i32_0 = arith.constant 0 : i32
    %c0_i32_1 = arith.constant 0 : i32
    return %c0_i32, %c0_i32_0 : i32, i32
  }
  func.func @transform_6(%arg0: i32) -> (i32, i32) {
    %c0_i32 = arith.constant 0 : i32
    %c0_i32_0 = arith.constant 0 : i32
    %c0_i32_1 = arith.constant 0 : i32
    return %c0_i32, %c0_i32_0 : i32, i32
  }
  func.func @transform_7(%arg0: i32) -> (i32, i32) {
    %c0_i32 = arith.constant 0 : i32
    %c0_i32_0 = arith.constant 0 : i32
    %c0_i32_1 = arith.constant 0 : i32
    return %c0_i32, %c0_i32_0 : i32, i32
  }
  func.func @transform_8(%arg0: i32) -> (i32, i32, i32) {
    %c0_i32 = arith.constant 0 : i32
    %c0_i32_0 = arith.constant 0 : i32
    %c0_i32_1 = arith.constant 0 : i32
    return %arg0, %c0_i32, %c0_i32_0 : i32, i32, i32
  }
}

</mosaic_0001>

<llo_original>
// kernel: regressor_forward.2
$region0: #{regressor_forward.2}
  #allocation0 [shape = 'u32[]', space=smem, size = 0x4, offset = 0x4, fixed_abs, tag = 'smem constant byte address 0x4 - core index']
  #allocation1 [shape = 'u32[72,128]{1,0:T(1,128)}', space=vmem, size = 0x9000, scoped, tag = 'internal scratch']
  %s0 = inlined_call_operand.vmem [shape: f32[128,32], index: 0, kind: input, shape index: {}]
  %s1 = inlined_call_operand.vmem [shape: f32[32,128], index: 1, kind: input, shape index: {}]
  %s2 = inlined_call_operand.vmem [shape: f32[1,1,128], index: 2, kind: output, shape index: {0}]
  %s3 = inlined_call_operand.vmem [shape: f32[1,1,128], index: 3, kind: output, shape index: {1}]
  %4 = xla_tuple %s2, %s3
  %s5 = sld [smem:[#allocation0]]
  $region26: #{regressor_forward.2} parent=0
    _
  %s7 = ssub.s32 1, %s5
  %s8 = scalar_select 0, %s7, %s5
  // Predicated region
  $region2: #{regressor_forward.2} parent=0 // pred_check
    _
  $region3: #{regressor_forward.2} parent=0 // pred_check_branch
    %10 = sbr.rel (0) target = $region5
  $region4: #{regressor_forward.2} parent=0 // pred_region
    _
  $region5: #{regressor_forward.2} parent=0 // pred_fallthru
    _
  // Predicated region
  $region6: #{regressor_forward.2} parent=0 // pred_check
    _
  $region7: #{regressor_forward.2} parent=0 // pred_check_branch
    %12 = sbr.rel (0) target = $region9
  $region8: #{regressor_forward.2} parent=0 // pred_region
    _
  $region9: #{regressor_forward.2} parent=0 // pred_fallthru
    _
  %s13 = smul.u32 0, 128
  %s14 = ssub.s32 8, %s13
  %v15 = vlaneseq
  %v16 = vshrl.u32 %v15, 7
  %v17 = vadd.s32 %v16, 8
  %v18 = vadd.s32 %v16, 16
  %v19 = vadd.s32 %v16, 24
  %v20 = vadd.s32 %v16, 32
  %v21 = vadd.s32 %v16, 40
  %v22 = vadd.s32 %v16, 48
  %v23 = vadd.s32 %v16, 56
  %v24 = vadd.s32 %v16, 64
  %v25 = vadd.s32 %v16, 72
  %v26 = vadd.s32 %v16, 80
  %v27 = vadd.s32 %v16, 88
  %v28 = vadd.s32 %v16, 96
  %v29 = vadd.s32 %v16, 104
  %v30 = vadd.s32 %v16, 112
  %v31 = vadd.s32 %v16, 120
  %v32 = vstv %s14
  %vm33 = vcmp.lt.s32.totalorder %v16, %v32
  %vm34 = vcmp.lt.s32.totalorder %v17, %v32
  %vm35 = vcmp.lt.s32.totalorder %v18, %v32
  %vm36 = vcmp.lt.s32.totalorder %v19, %v32
  %vm37 = vcmp.lt.s32.totalorder %v20, %v32
  %vm38 = vcmp.lt.s32.totalorder %v21, %v32
  %vm39 = vcmp.lt.s32.totalorder %v22, %v32
  %vm40 = vcmp.lt.s32.totalorder %v23, %v32
  %vm41 = vcmp.lt.s32.totalorder %v24, %v32
  %vm42 = vcmp.lt.s32.totalorder %v25, %v32
  %vm43 = vcmp.lt.s32.totalorder %v26, %v32
  %vm44 = vcmp.lt.s32.totalorder %v27, %v32
  %vm45 = vcmp.lt.s32.totalorder %v28, %v32
  %vm46 = vcmp.lt.s32.totalorder %v29, %v32
  %vm47 = vcmp.lt.s32.totalorder %v30, %v32
  %vm48 = vcmp.lt.s32.totalorder %v31, %v32
  %v49 = vld [vmem:[%s0] sm:$0xff]
  %v50 = vld [vmem:[%s0 + $0x8] sm:$0xff]
  %v51 = vld [vmem:[%s0 + $0x10] sm:$0xff]
  %v52 = vld [vmem:[%s0 + $0x18] sm:$0xff]
  %v53 = vld [vmem:[%s0 + $0x20] sm:$0xff]
  %v54 = vld [vmem:[%s0 + $0x28] sm:$0xff]
  %v55 = vld [vmem:[%s0 + $0x30] sm:$0xff]
  %v56 = vld [vmem:[%s0 + $0x38] sm:$0xff]
  %v57 = vld [vmem:[%s0 + $0x40] sm:$0xff]
  %v58 = vld [vmem:[%s0 + $0x48] sm:$0xff]
  %v59 = vld [vmem:[%s0 + $0x50] sm:$0xff]
  %v60 = vld [vmem:[%s0 + $0x58] sm:$0xff]
  %v61 = vld [vmem:[%s0 + $0x60] sm:$0xff]
  %v62 = vld [vmem:[%s0 + $0x68] sm:$0xff]
  %v63 = vld [vmem:[%s0 + $0x70] sm:$0xff]
  %v64 = vld [vmem:[%s0 + $0x78] sm:$0xff]
  %v65 = vsel %vm33, 1, 0
  %v66 = vsel %vm34, 1, 0
  %v67 = vsel %vm35, 1, 0
  %v68 = vsel %vm36, 1, 0
  %v69 = vsel %vm37, 1, 0
  %v70 = vsel %vm38, 1, 0
  %v71 = vsel %vm39, 1, 0
  %v72 = vsel %vm40, 1, 0
  %v73 = vsel %vm41, 1, 0
  %v74 = vsel %vm42, 1, 0
  %v75 = vsel %vm43, 1, 0
  %v76 = vsel %vm44, 1, 0
  %v77 = vsel %vm45, 1, 0
  %v78 = vsel %vm46, 1, 0
  %v79 = vsel %vm47, 1, 0
  %v80 = vsel %vm48, 1, 0
  %vm81 = vcmp.eq.s32.totalorder %v65, 1
  %vm82 = vcmp.eq.s32.totalorder %v66, 1
  %vm83 = vcmp.eq.s32.totalorder %v67, 1
  %vm84 = vcmp.eq.s32.totalorder %v68, 1
  %vm85 = vcmp.eq.s32.totalorder %v69, 1
  %vm86 = vcmp.eq.s32.totalorder %v70, 1
  %vm87 = vcmp.eq.s32.totalorder %v71, 1
  %vm88 = vcmp.eq.s32.totalorder %v72, 1
  %vm89 = vcmp.eq.s32.totalorder %v73, 1
  %vm90 = vcmp.eq.s32.totalorder %v74, 1
  %vm91 = vcmp.eq.s32.totalorder %v75, 1
  %vm92 = vcmp.eq.s32.totalorder %v76, 1
  %vm93 = vcmp.eq.s32.totalorder %v77, 1
  %vm94 = vcmp.eq.s32.totalorder %v78, 1
  %vm95 = vcmp.eq.s32.totalorder %v79, 1
  %vm96 = vcmp.eq.s32.totalorder %v80, 1
  %v97 = vsel %vm81, %v49, 0.0
  %v98 = vsel %vm82, %v50, 0.0
  %v99 = vsel %vm83, %v51, 0.0
  %v100 = vsel %vm84, %v52, 0.0
  %v101 = vsel %vm85, %v53, 0.0
  %v102 = vsel %vm86, %v54, 0.0
  %v103 = vsel %vm87, %v55, 0.0
  %v104 = vsel %vm88, %v56, 0.0
  %v105 = vsel %vm89, %v57, 0.0
  %v106 = vsel %vm90, %v58, 0.0
  %v107 = vsel %vm91, %v59, 0.0
  %v108 = vsel %vm92, %v60, 0.0
  %v109 = vsel %vm93, %v61, 0.0
  %v110 = vsel %vm94, %v62, 0.0
  %v111 = vsel %vm95, %v63, 0.0
  %v112 = vsel %vm96, %v64, 0.0
  %v113 = vld [vmem:[%s1] sm:$0xff]
  %v114 = vld [vmem:[%s1 + $0x8] sm:$0xff]
  %v115 = vld [vmem:[%s1 + $0x10] sm:$0xff]
  %v116 = vld [vmem:[%s1 + $0x18] sm:$0xff]
  %vm117 = vcmask 261120
  %v119 = vsel %vm117, %v97, 0
  %v122 = vsel %vm117, %v98, 0
  %v125 = vsel %vm117, %v99, 0
  %v128 = vsel %vm117, %v100, 0
  %v131 = vsel %vm117, %v101, 0
  %v134 = vsel %vm117, %v102, 0
  %v137 = vsel %vm117, %v103, 0
  %v140 = vsel %vm117, %v104, 0
  %v143 = vsel %vm117, %v105, 0
  %v146 = vsel %vm117, %v106, 0
  %v149 = vsel %vm117, %v107, 0
  %v152 = vsel %vm117, %v108, 0
  %v155 = vsel %vm117, %v109, 0
  %v158 = vsel %vm117, %v110, 0
  %v161 = vsel %vm117, %v111, 0
  %v164 = vsel %vm117, %v112, 0
  %166 = vmatpush.msra.mxu0 0.0
  %167 = vmatpush.msra.mxu0 0.0
  %168 = vmatpush.msra.mxu0 0.0
  %169 = vmatpush.msra.mxu0 0.0
  %170 = vmatpush.msra.mxu0 0.0
  %171 = vmatpush.msra.mxu0 0.0
  %172 = vmatpush.msra.mxu0 0.0
  %173 = vmatpush.msra.mxu0 0.0
  %174 = vmatpush.msra.mxu0 0.0
  %175 = vmatpush.msra.mxu0 0.0
  %176 = vmatpush.msra.mxu0 0.0
  %177 = vmatpush.msra.mxu0 0.0
  %178 = vmatpush.msra.mxu0 %v116
  %179 = vmatpush.msra.mxu0 %v115
  %180 = vmatpush.msra.mxu0 %v114
  %181 = vmatpush.msra.mxu0 %v113
  %182 = vmatmul.f32.gmra.mxu0 %v119
  %v183 = vpop.f32.mrf.mxu0
  %v184 = vadd.f32 0.0, %v183
  %185 = vmatmul.f32.gmra.mxu0 %v122
  %v186 = vpop.f32.mrf.mxu0
  %v187 = vadd.f32 0.0, %v186
  %188 = vmatmul.f32.gmra.mxu0 %v125
  %v189 = vpop.f32.mrf.mxu0
  %v190 = vadd.f32 0.0, %v189
  %191 = vmatmul.f32.gmra.mxu0 %v128
  %v192 = vpop.f32.mrf.mxu0
  %v193 = vadd.f32 0.0, %v192
  %194 = vmatmul.f32.gmra.mxu0 %v131
  %v195 = vpop.f32.mrf.mxu0
  %v196 = vadd.f32 0.0, %v195
  %197 = vmatmul.f32.gmra.mxu0 %v134
  %v198 = vpop.f32.mrf.mxu0
  %v199 = vadd.f32 0.0, %v198
  %200 = vmatmul.f32.gmra.mxu0 %v137
  %v201 = vpop.f32.mrf.mxu0
  %v202 = vadd.f32 0.0, %v201
  %203 = vmatmul.f32.gmra.mxu0 %v140
  %v204 = vpop.f32.mrf.mxu0
  %v205 = vadd.f32 0.0, %v204
  %206 = vmatmul.f32.gmra.mxu0 %v143
  %v207 = vpop.f32.mrf.mxu0
  %v208 = vadd.f32 0.0, %v207
  %209 = vmatmul.f32.gmra.mxu0 %v146
  %v210 = vpop.f32.mrf.mxu0
  %v211 = vadd.f32 0.0, %v210
  %212 = vmatmul.f32.gmra.mxu0 %v149
  %v213 = vpop.f32.mrf.mxu0
  %v214 = vadd.f32 0.0, %v213
  %215 = vmatmul.f32.gmra.mxu0 %v152
  %v216 = vpop.f32.mrf.mxu0
  %v217 = vadd.f32 0.0, %v216
  %218 = vmatmul.f32.gmra.mxu0 %v155
  %v219 = vpop.f32.mrf.mxu0
  %v220 = vadd.f32 0.0, %v219
  %221 = vmatmul.f32.gmra.mxu0 %v158
  %v222 = vpop.f32.mrf.mxu0
  %v223 = vadd.f32 0.0, %v222
  %224 = vmatmul.f32.gmra.mxu0 %v161
  %v225 = vpop.f32.mrf.mxu0
  %v226 = vadd.f32 0.0, %v225
  %227 = vmatmul.f32.gmra.mxu0 %v164
  %v228 = vpop.f32.mrf.mxu0
  %v229 = vadd.f32 0.0, %v228
  %230 = vdwg.mxu0
  %v231 = vadd.f32 %v184, %v187
  %v232 = vadd.f32 %v231, %v190
  %v233 = vadd.f32 %v232, %v193
  %v234 = vadd.f32 %v233, %v196
  %v235 = vadd.f32 %v234, %v199
  %v236 = vadd.f32 %v235, %v202
  %v237 = vadd.f32 %v236, %v205
  %v238 = vadd.f32 %v237, %v208
  %v239 = vadd.f32 %v238, %v211
  %v240 = vadd.f32 %v239, %v214
  %v241 = vadd.f32 %v240, %v217
  %v242 = vadd.f32 %v241, %v220
  %v243 = vadd.f32 %v242, %v223
  %v244 = vadd.f32 %v243, %v226
  %v245 = vadd.f32 %v244, %v229
  %v246 = vrot.slane %v245, 4
  %v247 = vadd.f32 %v245, %v246
  %v248 = vrot.slane %v247, 2
  %v249 = vadd.f32 %v247, %v248
  %v250 = vrot.slane %v249, 1
  %v251 = vadd.f32 %v249, %v250
  %252 = vst [vmem:[%s2] sm:$0x1] %v251
  %v253 = vmul.f32 %v184, %v184
  %v254 = vmul.f32 %v187, %v187
  %v255 = vmul.f32 %v190, %v190
  %v256 = vmul.f32 %v193, %v193
  %v257 = vmul.f32 %v196, %v196
  %v258 = vmul.f32 %v199, %v199
  %v259 = vmul.f32 %v202, %v202
  %v260 = vmul.f32 %v205, %v205
  %v261 = vmul.f32 %v208, %v208
  %v262 = vmul.f32 %v211, %v211
  %v263 = vmul.f32 %v214, %v214
  %v264 = vmul.f32 %v217, %v217
  %v265 = vmul.f32 %v220, %v220
  %v266 = vmul.f32 %v223, %v223
  %v267 = vmul.f32 %v226, %v226
  %v268 = vmul.f32 %v229, %v229
  %v269 = vadd.f32 %v253, %v254
  %v270 = vadd.f32 %v269, %v255
  %v271 = vadd.f32 %v270, %v256
  %v272 = vadd.f32 %v271, %v257
  %v273 = vadd.f32 %v272, %v258
  %v274 = vadd.f32 %v273, %v259
  %v275 = vadd.f32 %v274, %v260
  %v276 = vadd.f32 %v275, %v261
  %v277 = vadd.f32 %v276, %v262
  %v278 = vadd.f32 %v277, %v263
  %v279 = vadd.f32 %v278, %v264
  %v280 = vadd.f32 %v279, %v265
  %v281 = vadd.f32 %v280, %v266
  %v282 = vadd.f32 %v281, %v267
  %v283 = vadd.f32 %v282, %v268
  %v284 = vrot.slane %v283, 4
  %v285 = vadd.f32 %v283, %v284
  %v286 = vrot.slane %v285, 2
  %v287 = vadd.f32 %v285, %v286
  %v288 = vrot.slane %v287, 1
  %v289 = vadd.f32 %v287, %v288
  %290 = vst [vmem:[%s3] sm:$0x1] %v289
  // Predicated region
  $region10: #{regressor_forward.2} parent=0 // pred_check
    _
  $region11: #{regressor_forward.2} parent=0 // pred_check_branch
    %292 = sbr.rel (0) target = $region13
  $region12: #{regressor_forward.2} parent=0 // pred_region
    _
  $region13: #{regressor_forward.2} parent=0 // pred_fallthru
    _
  // Predicated region
  $region14: #{regressor_forward.2} parent=0 // pred_check
    _
  $region15: #{regressor_forward.2} parent=0 // pred_check_branch
    %294 = sbr.rel (0) target = $region17
  $region16: #{regressor_forward.2} parent=0 // pred_region
    _
  $region17: #{regressor_forward.2} parent=0 // pred_fallthru
    _
  // Predicated region
  $region18: #{regressor_forward.2} parent=0 // pred_check
    _
  $region19: #{regressor_forward.2} parent=0 // pred_check_branch
    %296 = sbr.rel (0) target = $region21
  $region20: #{regressor_forward.2} parent=0 // pred_region
    _
  $region21: #{regressor_forward.2} parent=0 // pred_fallthru
    _
  // Predicated region
  $region22: #{regressor_forward.2} parent=0 // pred_check
    _
  $region23: #{regressor_forward.2} parent=0 // pred_check_branch
    %298 = sbr.rel (0) target = $region25
  $region24: #{regressor_forward.2} parent=0 // pred_region
    _
  $region25: #{regressor_forward.2} parent=0 // pred_fallthru
    _

// kernel: regressor_forward.3
$region0: #{regressor_forward.3}
  #allocation0 [shape = 'u32[]', space=smem, size = 0x4, offset = 0x4, fixed_abs, tag = 'smem constant byte address 0x4 - core index']
  #allocation1 [shape = 'u32[72,128]{1,0:T(1,128)}', space=vmem, size = 0x9000, scoped, tag = 'internal scratch']
  #allocation2 [shape = 'f32[1,1]{1,0:T(1,128)S(1)}', space=vmem, size = 0x200, scoped, tag = 'scoped memory for regressor_forward.3']
  %s0 = inlined_call_operand.vmem [shape: f32[128,32], index: 0, kind: input, shape index: {}]
  %s1 = inlined_call_operand.vmem [shape: f32[32,128], index: 1, kind: input, shape index: {}]
  %s2 = inlined_call_operand.vmem [shape: f32[1,1,128], index: 2, kind: input, shape index: {}]
  %s3 = inlined_call_operand.vmem [shape: f32[1,1,128], index: 3, kind: input, shape index: {}]
  %s4 = inlined_call_operand.vmem [shape: f32[1,128], index: 4, kind: input, shape index: {}]
  %s5 = inlined_call_operand.vmem [shape: f32[1,128], index: 5, kind: input, shape index: {}]
  %s6 = inlined_call_operand.vmem [shape: f32[1,128], index: 6, kind: input, shape index: {}]
  %s7 = inlined_call_operand.<no memory space> [shape: f32[1,1], index: 7, kind: input, shape index: {}]
  %s8 = inlined_call_operand.vmem [shape: f32[1,1,128], index: 8, kind: output, shape index: {}]
  %s9 = sld [smem:[#allocation0]]
  $region42: #{regressor_forward.3} parent=0
    _
  %s11 = ssub.s32 1, %s9
  %s12 = scalar_select 0, %s11, %s9
  %v13 = vstv %s7
  %14 = vst [vmem:[#allocation2] sm:$0x1] %v13
  // Predicated region
  $region2: #{regressor_forward.3} parent=0 // pred_check
    _
  $region3: #{regressor_forward.3} parent=0 // pred_check_branch
    %16 = sbr.rel (0) target = $region5
  $region4: #{regressor_forward.3} parent=0 // pred_region
    _
  $region5: #{regressor_forward.3} parent=0 // pred_fallthru
    _
  // Predicated region
  $region6: #{regressor_forward.3} parent=0 // pred_check
    _
  $region7: #{regressor_forward.3} parent=0 // pred_check_branch
    %18 = sbr.rel (0) target = $region9
  $region8: #{regressor_forward.3} parent=0 // pred_region
    _
  $region9: #{regressor_forward.3} parent=0 // pred_fallthru
    _
  // Predicated region
  $region10: #{regressor_forward.3} parent=0 // pred_check
    _
  $region11: #{regressor_forward.3} parent=0 // pred_check_branch
    %20 = sbr.rel (0) target = $region13
  $region12: #{regressor_forward.3} parent=0 // pred_region
    _
  $region13: #{regressor_forward.3} parent=0 // pred_fallthru
    _
  // Predicated region
  $region14: #{regressor_forward.3} parent=0 // pred_check
    _
  $region15: #{regressor_forward.3} parent=0 // pred_check_branch
    %22 = sbr.rel (0) target = $region17
  $region16: #{regressor_forward.3} parent=0 // pred_region
    _
  $region17: #{regressor_forward.3} parent=0 // pred_fallthru
    _
  // Predicated region
  $region18: #{regressor_forward.3} parent=0 // pred_check
    _
  $region19: #{regressor_forward.3} parent=0 // pred_check_branch
    %24 = sbr.rel (0) target = $region21
  $region20: #{regressor_forward.3} parent=0 // pred_region
    _
  $region21: #{regressor_forward.3} parent=0 // pred_fallthru
    _
  // Predicated region
  $region22: #{regressor_forward.3} parent=0 // pred_check
    _
  $region23: #{regressor_forward.3} parent=0 // pred_check_branch
    %26 = sbr.rel (0) target = $region25
  $region24: #{regressor_forward.3} parent=0 // pred_region
    _
  $region25: #{regressor_forward.3} parent=0 // pred_fallthru
    _
  // Predicated region
  $region26: #{regressor_forward.3} parent=0 // pred_check
    _
  $region27: #{regressor_forward.3} parent=0 // pred_check_branch
    %28 = sbr.rel (0) target = $region29
  $region28: #{regressor_forward.3} parent=0 // pred_region
    _
  $region29: #{regressor_forward.3} parent=0 // pred_fallthru
    _
  // Predicated region
  $region30: #{regressor_forward.3} parent=0 // pred_check
    _
  $region31: #{regressor_forward.3} parent=0 // pred_check_branch
    %30 = sbr.rel (0) target = $region33
  $region32: #{regressor_forward.3} parent=0 // pred_region
    _
  $region33: #{regressor_forward.3} parent=0 // pred_fallthru
    _
  %v31 = vld [vmem:[%s2] sm:$0x1]
  %v32 = vadd.f32 %v31, 0.0
  %v33 = vld [vmem:[%s3] sm:$0x1]
  %v34 = vadd.f32 %v33, 0.0
  %v35 = vmul.f32 %v32, 0.125
  %v36 = vmul.f32 %v34, 0.125
  %v37 = vmul.f32 %v35, %v35
  %v38 = vsub.f32 %v36, %v37
  %v39 = vmax.f32 %v38, 0.0
  %v40 = vld [vmem:[%s4] sm:$0x1]
  %v41 = vadd.f32 %v39, 1e-05
  %v42 = vrsqrt.pop %v41
  %v43 = vmul.f32 %v42, %v41
  %v44 = vmul.f32 %v43, %v42
  %v45 = vmul.f32 0.5, %v44
  %v46 = vsub.f32 1.5, %v45
  %v47 = vmul.f32 %v42, %v46
  %vm48 = vweird.f32 %v41
  %vm49 = vweird.f32 %v42
  %vm50 = vmor %vm48, %vm49
  %v51 = vsel %vm50, %v42, %v47
  %v52 = vmul.f32 %v40, %v51
  %v53 = vld [vmem:[%s5] sm:$0x1]
  %v54 = vmul.f32 %v35, %v52
  %v55 = vsub.f32 %v53, %v54
  %v56 = vld [vmem:[%s0] sm:$0xff]
  %v57 = vld [vmem:[%s0 + $0x8] sm:$0xff]
  %v58 = vld [vmem:[%s0 + $0x10] sm:$0xff]
  %v59 = vld [vmem:[%s0 + $0x18] sm:$0xff]
  %v60 = vld [vmem:[%s0 + $0x20] sm:$0xff]
  %v61 = vld [vmem:[%s0 + $0x28] sm:$0xff]
  %v62 = vld [vmem:[%s0 + $0x30] sm:$0xff]
  %v63 = vld [vmem:[%s0 + $0x38] sm:$0xff]
  %v64 = vld [vmem:[%s0 + $0x40] sm:$0xff]
  %v65 = vld [vmem:[%s0 + $0x48] sm:$0xff]
  %v66 = vld [vmem:[%s0 + $0x50] sm:$0xff]
  %v67 = vld [vmem:[%s0 + $0x58] sm:$0xff]
  %v68 = vld [vmem:[%s0 + $0x60] sm:$0xff]
  %v69 = vld [vmem:[%s0 + $0x68] sm:$0xff]
  %v70 = vld [vmem:[%s0 + $0x70] sm:$0xff]
  %v71 = vld [vmem:[%s0 + $0x78] sm:$0xff]
  %v72 = vld [vmem:[%s1] sm:$0xff]
  %v73 = vld [vmem:[%s1 + $0x8] sm:$0xff]
  %v74 = vld [vmem:[%s1 + $0x10] sm:$0xff]
  %v75 = vld [vmem:[%s1 + $0x18] sm:$0xff]
  %vm76 = vcmask 261120
  %v78 = vsel %vm76, %v56, 0
  %v81 = vsel %vm76, %v57, 0
  %v84 = vsel %vm76, %v58, 0
  %v87 = vsel %vm76, %v59, 0
  %v90 = vsel %vm76, %v60, 0
  %v93 = vsel %vm76, %v61, 0
  %v96 = vsel %vm76, %v62, 0
  %v99 = vsel %vm76, %v63, 0
  %v102 = vsel %vm76, %v64, 0
  %v105 = vsel %vm76, %v65, 0
  %v108 = vsel %vm76, %v66, 0
  %v111 = vsel %vm76, %v67, 0
  %v114 = vsel %vm76, %v68, 0
  %v117 = vsel %vm76, %v69, 0
  %v120 = vsel %vm76, %v70, 0
  %v123 = vsel %vm76, %v71, 0
  %125 = vmatpush.msra.mxu0 0.0
  %126 = vmatpush.msra.mxu0 0.0
  %127 = vmatpush.msra.mxu0 0.0
  %128 = vmatpush.msra.mxu0 0.0
  %129 = vmatpush.msra.mxu0 0.0
  %130 = vmatpush.msra.mxu0 0.0
  %131 = vmatpush.msra.mxu0 0.0
  %132 = vmatpush.msra.mxu0 0.0
  %133 = vmatpush.msra.mxu0 0.0
  %134 = vmatpush.msra.mxu0 0.0
  %135 = vmatpush.msra.mxu0 0.0
  %136 = vmatpush.msra.mxu0 0.0
  %137 = vmatpush.msra.mxu0 %v75
  %138 = vmatpush.msra.mxu0 %v74
  %139 = vmatpush.msra.mxu0 %v73
  %140 = vmatpush.msra.mxu0 %v72
  %141 = vmatmul.f32.gmra.mxu0 %v78
  %v142 = vpop.f32.mrf.mxu0
  %v143 = vadd.f32 0.0, %v142
  %144 = vmatmul.f32.gmra.mxu0 %v81
  %v145 = vpop.f32.mrf.mxu0
  %v146 = vadd.f32 0.0, %v145
  %147 = vmatmul.f32.gmra.mxu0 %v84
  %v148 = vpop.f32.mrf.mxu0
  %v149 = vadd.f32 0.0, %v148
  %150 = vmatmul.f32.gmra.mxu0 %v87
  %v151 = vpop.f32.mrf.mxu0
  %v152 = vadd.f32 0.0, %v151
  %153 = vmatmul.f32.gmra.mxu0 %v90
  %v154 = vpop.f32.mrf.mxu0
  %v155 = vadd.f32 0.0, %v154
  %156 = vmatmul.f32.gmra.mxu0 %v93
  %v157 = vpop.f32.mrf.mxu0
  %v158 = vadd.f32 0.0, %v157
  %159 = vmatmul.f32.gmra.mxu0 %v96
  %v160 = vpop.f32.mrf.mxu0
  %v161 = vadd.f32 0.0, %v160
  %162 = vmatmul.f32.gmra.mxu0 %v99
  %v163 = vpop.f32.mrf.mxu0
  %v164 = vadd.f32 0.0, %v163
  %165 = vmatmul.f32.gmra.mxu0 %v102
  %v166 = vpop.f32.mrf.mxu0
  %v167 = vadd.f32 0.0, %v166
  %168 = vmatmul.f32.gmra.mxu0 %v105
  %v169 = vpop.f32.mrf.mxu0
  %v170 = vadd.f32 0.0, %v169
  %171 = vmatmul.f32.gmra.mxu0 %v108
  %v172 = vpop.f32.mrf.mxu0
  %v173 = vadd.f32 0.0, %v172
  %174 = vmatmul.f32.gmra.mxu0 %v111
  %v175 = vpop.f32.mrf.mxu0
  %v176 = vadd.f32 0.0, %v175
  %177 = vmatmul.f32.gmra.mxu0 %v114
  %v178 = vpop.f32.mrf.mxu0
  %v179 = vadd.f32 0.0, %v178
  %180 = vmatmul.f32.gmra.mxu0 %v117
  %v181 = vpop.f32.mrf.mxu0
  %v182 = vadd.f32 0.0, %v181
  %183 = vmatmul.f32.gmra.mxu0 %v120
  %v184 = vpop.f32.mrf.mxu0
  %v185 = vadd.f32 0.0, %v184
  %186 = vmatmul.f32.gmra.mxu0 %v123
  %v187 = vpop.f32.mrf.mxu0
  %v188 = vadd.f32 0.0, %v187
  %189 = vdwg.mxu0
  %v191 = vperm.slane %v52, 0
  %v193 = vmul.f32 %v143, %v191
  %v194 = vmul.f32 %v146, %v191
  %v195 = vmul.f32 %v149, %v191
  %v196 = vmul.f32 %v152, %v191
  %v197 = vmul.f32 %v155, %v191
  %v198 = vmul.f32 %v158, %v191
  %v199 = vmul.f32 %v161, %v191
  %v200 = vmul.f32 %v164, %v191
  %v201 = vmul.f32 %v167, %v191
  %v202 = vmul.f32 %v170, %v191
  %v203 = vmul.f32 %v173, %v191
  %v204 = vmul.f32 %v176, %v191
  %v205 = vmul.f32 %v179, %v191
  %v206 = vmul.f32 %v182, %v191
  %v207 = vmul.f32 %v185, %v191
  %v208 = vmul.f32 %v188, %v191
  %v210 = vperm.slane %v55, 0
  %v212 = vadd.f32 %v193, %v210
  %v213 = vadd.f32 %v194, %v210
  %v214 = vadd.f32 %v195, %v210
  %v215 = vadd.f32 %v196, %v210
  %v216 = vadd.f32 %v197, %v210
  %v217 = vadd.f32 %v198, %v210
  %v218 = vadd.f32 %v199, %v210
  %v219 = vadd.f32 %v200, %v210
  %v220 = vadd.f32 %v201, %v210
  %v221 = vadd.f32 %v202, %v210
  %v222 = vadd.f32 %v203, %v210
  %v223 = vadd.f32 %v204, %v210
  %v224 = vadd.f32 %v205, %v210
  %v225 = vadd.f32 %v206, %v210
  %v226 = vadd.f32 %v207, %v210
  %v227 = vadd.f32 %v208, %v210
  %v228 = vmax.f32 %v212, 0.0
  %v229 = vmax.f32 %v213, 0.0
  %v230 = vmax.f32 %v214, 0.0
  %v231 = vmax.f32 %v215, 0.0
  %v232 = vmax.f32 %v216, 0.0
  %v233 = vmax.f32 %v217, 0.0
  %v234 = vmax.f32 %v218, 0.0
  %v235 = vmax.f32 %v219, 0.0
  %v236 = vmax.f32 %v220, 0.0
  %v237 = vmax.f32 %v221, 0.0
  %v238 = vmax.f32 %v222, 0.0
  %v239 = vmax.f32 %v223, 0.0
  %v240 = vmax.f32 %v224, 0.0
  %v241 = vmax.f32 %v225, 0.0
  %v242 = vmax.f32 %v226, 0.0
  %v243 = vmax.f32 %v227, 0.0
  %v244 = vld [vmem:[%s6] sm:$0x1]
  %v246 = vperm.slane %v244, 0
  %v248 = vmul.f32 %v228, %v246
  %v249 = vmul.f32 %v229, %v246
  %v250 = vmul.f32 %v230, %v246
  %v251 = vmul.f32 %v231, %v246
  %v252 = vmul.f32 %v232, %v246
  %v253 = vmul.f32 %v233, %v246
  %v254 = vmul.f32 %v234, %v246
  %v255 = vmul.f32 %v235, %v246
  %v256 = vmul.f32 %v236, %v246
  %v257 = vmul.f32 %v237, %v246
  %v258 = vmul.f32 %v238, %v246
  %v259 = vmul.f32 %v239, %v246
  %v260 = vmul.f32 %v240, %v246
  %v261 = vmul.f32 %v241, %v246
  %v262 = vmul.f32 %v242, %v246
  %v263 = vmul.f32 %v243, %v246
  %264 = vadd.xlane.f32.xlu0 %v248
  %v265 = vpop.xlane.xlu0 %264
  %266 = vadd.xlane.f32.xlu0 %v249
  %v267 = vpop.xlane.xlu0 %266
  %268 = vadd.xlane.f32.xlu0 %v250
  %v269 = vpop.xlane.xlu0 %268
  %270 = vadd.xlane.f32.xlu0 %v251
  %v271 = vpop.xlane.xlu0 %270
  %272 = vadd.xlane.f32.xlu0 %v252
  %v273 = vpop.xlane.xlu0 %272
  %274 = vadd.xlane.f32.xlu0 %v253
  %v275 = vpop.xlane.xlu0 %274
  %276 = vadd.xlane.f32.xlu0 %v254
  %v277 = vpop.xlane.xlu0 %276
  %278 = vadd.xlane.f32.xlu0 %v255
  %v279 = vpop.xlane.xlu0 %278
  %280 = vadd.xlane.f32.xlu0 %v256
  %v281 = vpop.xlane.xlu0 %280
  %282 = vadd.xlane.f32.xlu0 %v257
  %v283 = vpop.xlane.xlu0 %282
  %284 = vadd.xlane.f32.xlu0 %v258
  %v285 = vpop.xlane.xlu0 %284
  %286 = vadd.xlane.f32.xlu0 %v259
  %v287 = vpop.xlane.xlu0 %286
  %288 = vadd.xlane.f32.xlu0 %v260
  %v289 = vpop.xlane.xlu0 %288
  %290 = vadd.xlane.f32.xlu0 %v261
  %v291 = vpop.xlane.xlu0 %290
  %292 = vadd.xlane.f32.xlu0 %v262
  %v293 = vpop.xlane.xlu0 %292
  %294 = vadd.xlane.f32.xlu0 %v263
  %v295 = vpop.xlane.xlu0 %294
  %v296 = vld [vmem:[#allocation2] sm:$0x1]
  %298 = vset.pattern.permute.xlu0 0
  %299 = vperm.xlu0 %298, %v296
  %v300 = vpop.permute.xlu0 %299
  %v302 = vperm.slane %v300, 0
  %v303 = vadd.f32 %v265, %v302
  %v304 = vadd.f32 %v267, %v302
  %v305 = vadd.f32 %v269, %v302
  %v306 = vadd.f32 %v271, %v302
  %v307 = vadd.f32 %v273, %v302
  %v308 = vadd.f32 %v275, %v302
  %v309 = vadd.f32 %v277, %v302
  %v310 = vadd.f32 %v279, %v302
  %v311 = vadd.f32 %v281, %v302
  %v312 = vadd.f32 %v283, %v302
  %v313 = vadd.f32 %v285, %v302
  %v314 = vadd.f32 %v287, %v302
  %v315 = vadd.f32 %v289, %v302
  %v316 = vadd.f32 %v291, %v302
  %v317 = vadd.f32 %v293, %v302
  %v318 = vadd.f32 %v295, %v302
  %v335 = vlaneseq
  %v336 = vand.u32 %v335, 127
  %v337 = vperm.slane %v303, %v336
  %v338 = vadd.s32 %v336, 4294967288
  %v339 = vperm.slane %v304, %v338
  %vm340 = vcmask 130112
  %v341 = vsel %vm340, %v339, %v337
  %v342 = vadd.s32 %v336, 4294967280
  %v343 = vperm.slane %v305, %v342
  %vm344 = vcmask 195712
  %v345 = vsel %vm344, %v343, %v341
  %v346 = vadd.s32 %v336, 4294967272
  %v347 = vperm.slane %v306, %v346
  %vm348 = vcmask 261312
  %v349 = vsel %vm348, %v347, %v345
  %v350 = vadd.s32 %v336, 4294967264
  %v351 = vperm.slane %v307, %v350
  %vm352 = vcmask 326912
  %v353 = vsel %vm352, %v351, %v349
  %v354 = vadd.s32 %v336, 4294967256
  %v355 = vperm.slane %v308, %v354
  %vm356 = vcmask 392512
  %v357 = vsel %vm356, %v355, %v353
  %v358 = vadd.s32 %v336, 4294967248
  %v359 = vperm.slane %v309, %v358
  %vm360 = vcmask 458112
  %v361 = vsel %vm360, %v359, %v357
  %v362 = vadd.s32 %v336, 4294967240
  %v363 = vperm.slane %v310, %v362
  %vm364 = vcmask 523712
  %v365 = vsel %vm364, %v363, %v361
  %v366 = vadd.s32 %v336, 4294967232
  %v367 = vperm.slane %v311, %v366
  %vm368 = vcmask 589312
  %v369 = vsel %vm368, %v367, %v365
  %v370 = vadd.s32 %v336, 4294967224
  %v371 = vperm.slane %v312, %v370
  %vm372 = vcmask 654912
  %v373 = vsel %vm372, %v371, %v369
  %v374 = vadd.s32 %v336, 4294967216
  %v375 = vperm.slane %v313, %v374
  %vm376 = vcmask 720512
  %v377 = vsel %vm376, %v375, %v373
  %v378 = vadd.s32 %v336, 4294967208
  %v379 = vperm.slane %v314, %v378
  %vm380 = vcmask 786112
  %v381 = vsel %vm380, %v379, %v377
  %v382 = vadd.s32 %v336, 4294967200
  %v383 = vperm.slane %v315, %v382
  %vm384 = vcmask 851712
  %v385 = vsel %vm384, %v383, %v381
  %v386 = vadd.s32 %v336, 4294967192
  %v387 = vperm.slane %v316, %v386
  %vm388 = vcmask 917312
  %v389 = vsel %vm388, %v387, %v385
  %v390 = vadd.s32 %v336, 4294967184
  %v391 = vperm.slane %v317, %v390
  %vm392 = vcmask 982912
  %v393 = vsel %vm392, %v391, %v389
  %v394 = vadd.s32 %v336, 4294967176
  %v395 = vperm.slane %v318, %v394
  %vm396 = vcmask 1048512
  %v397 = vsel %vm396, %v395, %v393
  %399 = vst [vmem:[%s8] sm:$0x1] %v397
  // Predicated region
  $region34: #{regressor_forward.3} parent=0 // pred_check
    _
  $region35: #{regressor_forward.3} parent=0 // pred_check_branch
    %401 = sbr.rel (0) target = $region37
  $region36: #{regressor_forward.3} parent=0 // pred_region
    _
  $region37: #{regressor_forward.3} parent=0 // pred_fallthru
    _
  // Predicated region
  $region38: #{regressor_forward.3} parent=0 // pred_check
    _
  $region39: #{regressor_forward.3} parent=0 // pred_check_branch
    %403 = sbr.rel (0) target = $region41
  $region40: #{regressor_forward.3} parent=0 // pred_region
    _
  $region41: #{regressor_forward.3} parent=0 // pred_fallthru
    _

</llo_original>
